<compile_context>
chip_gen: v7x
topology: tpu7x:2x2x1
jax: 0.10.0
libtpu: 0.0.40
codegen_flags: <defaults>
</compile_context>

<pallas_src>
import jax
import jax.numpy as jnp
import numpy as np
from jax.experimental import pallas as pl
from jax.experimental.pallas import tpu as pltpu

# ---- small, module-consistent settings ----
EMB_DIM = 128             # emb_dim (lane-aligned)
HIDDEN_DIM = 4 * EMB_DIM  # 4 * emb_dim = 512
BATCH = 2
SEQ = 8

_SQRT_2_OVER_PI = 0.7978845608028654  # sqrt(2/pi)


def _round_up(n, m):
    return -(-n // m) * m


def _gelu_tanh(x):
    # GELU (tanh approximation), exactly as the PyTorch GELU module (f32 math).
    return 0.5 * x * (1.0 + jnp.tanh(_SQRT_2_OVER_PI * (x + 0.044715 * x * x * x)))


# ---------------------------------------------------------------------------
# Fused FeedForward kernel: y = GELU(x @ W1 + b1) @ W2 + b2
# ---------------------------------------------------------------------------
def _ffn_kernel(x_ref, w1_ref, b1_ref, w2_ref, b2_ref, o_ref):
    # First GEMM: bf16 operands on the MXU, f32 accumulation.
    x = x_ref[...].astype(jnp.bfloat16)                                    # (tm, D)
    h = jnp.dot(x, w1_ref[...], preferred_element_type=jnp.float32)        # (tm, H) f32
    h = h + b1_ref[...]                                                    # bias broadcast (f32)
    g = _gelu_tanh(h)                                                      # f32 on VPU/EUP
    # TODO(synk): if the single EUP (tanh) becomes co-binding with the bf16 MXU
    # on v6e/v7x at large M, evaluate the tanh in bf16 there.
    y = jnp.dot(g.astype(jnp.bfloat16), w2_ref[...],
                preferred_element_type=jnp.float32)                        # (tm, D) f32
    y = y + b2_ref[...]
    o_ref[...] = y.astype(o_ref.dtype)


def _choose_row_tile(n_rows, tile_m):
    """Sublane-aligned row tile; >= 2 grid tiles when possible (v7x megacore)."""
    tile_m = min(tile_m, 2048)                 # VMEM-safe cap even on v7x (64 MiB phys)
    tm = min(tile_m, _round_up(n_rows, 8))
    tm = max(8, (tm // 8) * 8)
    if pl.cdiv(n_rows, tm) < 2 and n_rows > 8:
        tm = max(8, (_round_up(n_rows, 8) // 2 // 8) * 8)
    return tm


def feed_forward(x, w1, b1, w2, b2, *, tile_m=1024):
    """x: (..., D).  w1: (D, H), b1: (1, H), w2: (H, D), b2: (1, D)."""
    orig_shape = x.shape
    D = orig_shape[-1]
    H = w1.shape[1]

    # Flatten all leading dims into the GEMM row dimension. No jnp.pad copy:
    # Pallas masks the ragged last row block.
    x2 = x.reshape(-1, D)
    n_rows = x2.shape[0]
    tm = _choose_row_tile(n_rows, tile_m)
    grid = (pl.cdiv(n_rows, tm),)

    # One-time cast of the (tiny) weights to bf16 for native-rate MXU matmuls
    # and half the weight DMA bytes. Biases stay f32.
    w1b = w1.astype(jnp.bfloat16)
    w2b = w2.astype(jnp.bfloat16)

    # Explicit scoped-VMEM budget with 2x headroom (v5e default scoped limit is
    # 16 MiB; keep the cap below v7x's 64 MiB physical VMEM).
    itemsize = jnp.dtype(x.dtype).itemsize
    est = (2 * tm * D * itemsize          # x tile, double-buffered
           + 2 * tm * D * itemsize        # out tile, double-buffered
           + 2 * 2 * D * H * 2            # bf16 W1 + W2, double-buffered
           + 2 * (H + D) * 4              # biases
           + 2 * tm * H * 4)              # h / g intermediates (f32)
    vmem_limit = int(min(48 * 1024 * 1024, max(32 * 1024 * 1024, 2 * est)))

    out = pl.pallas_call(
        _ffn_kernel,
        out_shape=jax.ShapeDtypeStruct((n_rows, D), x.dtype),
        grid=grid,
        in_specs=[
            pl.BlockSpec((tm, D), lambda i: (i, 0)),   # x row tile
            pl.BlockSpec((D, H), lambda i: (0, 0)),    # W1 resident (bf16)
            pl.BlockSpec((1, H), lambda i: (0, 0)),    # b1 resident (f32)
            pl.BlockSpec((H, D), lambda i: (0, 0)),    # W2 resident (bf16)
            pl.BlockSpec((1, D), lambda i: (0, 0)),    # b2 resident (f32)
        ],
        out_specs=pl.BlockSpec((tm, D), lambda i: (i, 0)),
        compiler_params=pltpu.CompilerParams(
            dimension_semantics=("parallel",),
            vmem_limit_bytes=vmem_limit),
    )(x2, w1b, b1, w2b, b2)

    return out.reshape(orig_shape)


# ---------------------------------------------------------------------------
# Parameters (deterministic synthetic init, PyTorch-equivalent layout)
# ---------------------------------------------------------------------------
def init_params(key):
    k1, k2, k3, k4 = jax.random.split(key, 4)
    return {
        # stored (in_features, out_features) so the kernel computes x @ W,
        # identical math to PyTorch's x @ W.T with W stored (out, in).
        "w1": jax.random.normal(k1, (EMB_DIM, HIDDEN_DIM), jnp.float32) * 0.02,
        "b1": jax.random.normal(k2, (1, HIDDEN_DIM), jnp.float32) * 0.02,
        "w2": jax.random.normal(k3, (HIDDEN_DIM, EMB_DIM), jnp.float32) * 0.02,
        "b2": jax.random.normal(k4, (1, EMB_DIM), jnp.float32) * 0.02,
    }


# ---------------------------------------------------------------------------
# Pure-JAX reference (mirrors the PyTorch FeedForward module, f32)
# ---------------------------------------------------------------------------
def reference_forward(params, x):
    h = x @ params["w1"] + params["b1"][0]
    g = _gelu_tanh(h)
    return g @ params["w2"] + params["b2"][0]


if __name__ == "__main__":
    key = jax.random.PRNGKey(0)
    pkey, xkey = jax.random.split(key)
    params = init_params(pkey)
    x = jax.random.normal(xkey, (BATCH, SEQ, EMB_DIM), jnp.float32)

    fwd = jax.jit(feed_forward)
    y = jax.block_until_ready(
        fwd(x, params["w1"], params["b1"], params["w2"], params["b2"]))
    assert y.shape == (BATCH, SEQ, EMB_DIM)

    ref = jax.block_until_ready(reference_forward(params, x))
    # bf16 MXU operands -> looser tolerance than the pure-f32 path.
    np.testing.assert_allclose(np.asarray(y), np.asarray(ref),
                               rtol=2e-2, atol=5e-3)

    print("KERNEL_OK")
</pallas_src>

<mosaic_0001>
module attributes {stable_mosaic.version = 11 : i64} {
  func.func @_ffn_kernel(%arg0: i32, %arg1: memref<8x128xf32, #tpu.memory_space<vmem>>, %arg2: memref<128x512xbf16, #tpu.memory_space<vmem>>, %arg3: memref<1x512xf32, #tpu.memory_space<vmem>>, %arg4: memref<512x128xbf16, #tpu.memory_space<vmem>>, %arg5: memref<1x128xf32, #tpu.memory_space<vmem>>, %arg6: memref<8x128xf32, #tpu.memory_space<vmem>>) attributes {dimension_semantics = [#tpu.dimension_semantics<parallel>], iteration_bounds = array<i64: 2>, scalar_prefetch = 0 : i64, scratch_operands = 0 : i64, tpu.core_type = #tpu.core_type<tc>, window_params = [{transform_indices = @transform_0, window_bounds = array<i64: 8, 128>}, {pipeline_mode = #tpu.pipeline_mode<synchronous>, transform_indices = @transform_1, window_bounds = array<i64: 128, 512>}, {pipeline_mode = #tpu.pipeline_mode<synchronous>, transform_indices = @transform_2, window_bounds = array<i64: 1, 512>}, {pipeline_mode = #tpu.pipeline_mode<synchronous>, transform_indices = @transform_3, window_bounds = array<i64: 512, 128>}, {pipeline_mode = #tpu.pipeline_mode<synchronous>, transform_indices = @transform_4, window_bounds = array<i64: 1, 128>}, {transform_indices = @transform_5, window_bounds = array<i64: 8, 128>}]} {
    %c0 = arith.constant 0 : index
    %c0_0 = arith.constant 0 : index
    %0 = vector.load %arg1[%c0, %c0_0] : memref<8x128xf32, #tpu.memory_space<vmem>>, vector<8x128xf32>
    %1 = arith.truncf %0 : vector<8x128xf32> to vector<8x128xbf16>
    %c0_1 = arith.constant 0 : index
    %c0_2 = arith.constant 0 : index
    %2 = vector.load %arg2[%c0_1, %c0_2] : memref<128x512xbf16, #tpu.memory_space<vmem>>, vector<128x512xbf16>
    %cst = arith.constant dense<0.000000e+00> : vector<8x512xf32>
    %3 = tpu.matmul %1, %2, %cst {dimension_numbers = #tpu.dot_dimension_numbers<[1], [0], [0], [1], [0, 0, 1, 1], [], []>} : vector<8x128xbf16>, vector<128x512xbf16>, vector<8x512xf32> -> vector<8x512xf32>
    %c0_3 = arith.constant 0 : index
    %c0_4 = arith.constant 0 : index
    %4 = vector.load %arg3[%c0_3, %c0_4] : memref<1x512xf32, #tpu.memory_space<vmem>>, vector<1x512xf32>
    %5 = vector.broadcast %4 : vector<1x512xf32> to vector<8x512xf32>
    %6 = arith.addf %3, %5 : vector<8x512xf32>
    %cst_5 = arith.constant 5.000000e-01 : f32
    %7 = vector.broadcast %cst_5 : f32 to vector<8x512xf32>
    %8 = arith.mulf %7, %6 : vector<8x512xf32>
    %cst_6 = arith.constant 4.471500e-02 : f32
    %9 = vector.broadcast %cst_6 : f32 to vector<8x512xf32>
    %10 = arith.mulf %9, %6 : vector<8x512xf32>
    %11 = arith.mulf %10, %6 : vector<8x512xf32>
    %12 = arith.mulf %11, %6 : vector<8x512xf32>
    %13 = arith.addf %6, %12 : vector<8x512xf32>
    %cst_7 = arith.constant 0.797884583 : f32
    %14 = vector.broadcast %cst_7 : f32 to vector<8x512xf32>
    %15 = arith.mulf %14, %13 : vector<8x512xf32>
    %16 = math.tanh %15 : vector<8x512xf32>
    %cst_8 = arith.constant 1.000000e+00 : f32
    %17 = vector.broadcast %cst_8 : f32 to vector<8x512xf32>
    %18 = arith.addf %17, %16 : vector<8x512xf32>
    %19 = arith.mulf %8, %18 : vector<8x512xf32>
    %20 = arith.truncf %19 : vector<8x512xf32> to vector<8x512xbf16>
    %c0_9 = arith.constant 0 : index
    %c0_10 = arith.constant 0 : index
    %21 = vector.load %arg4[%c0_9, %c0_10] : memref<512x128xbf16, #tpu.memory_space<vmem>>, vector<512x128xbf16>
    %cst_11 = arith.constant dense<0.000000e+00> : vector<8x128xf32>
    %22 = tpu.matmul %20, %21, %cst_11 {dimension_numbers = #tpu.dot_dimension_numbers<[1], [0], [0], [1], [0, 0, 1, 1], [], []>} : vector<8x512xbf16>, vector<512x128xbf16>, vector<8x128xf32> -> vector<8x128xf32>
    %c0_12 = arith.constant 0 : index
    %c0_13 = arith.constant 0 : index
    %23 = vector.load %arg5[%c0_12, %c0_13] : memref<1x128xf32, #tpu.memory_space<vmem>>, vector<1x128xf32>
    %24 = vector.broadcast %23 : vector<1x128xf32> to vector<8x128xf32>
    %25 = arith.addf %22, %24 : vector<8x128xf32>
    %c0_14 = arith.constant 0 : index
    %c0_15 = arith.constant 0 : index
    %26 = vector.load %arg6[%c0_14, %c0_15] : memref<8x128xf32, #tpu.memory_space<vmem>>, vector<8x128xf32>
    tpu.vector_store %arg6[%c0_14, %c0_15], %25 {strides = array<i32>} : memref<8x128xf32, #tpu.memory_space<vmem>>, vector<8x128xf32>,
    return
  }
  func.func @transform_0(%arg0: i32) -> (i32, i32) {
    %c0_i32 = arith.constant 0 : i32
    %c0_i32_0 = arith.constant 0 : i32
    return %arg0, %c0_i32 : i32, i32
  }
  func.func @transform_1(%arg0: i32) -> (i32, i32) {
    %c0_i32 = arith.constant 0 : i32
    %c0_i32_0 = arith.constant 0 : i32
    %c0_i32_1 = arith.constant 0 : i32
    return %c0_i32, %c0_i32_0 : i32, i32
  }
  func.func @transform_2(%arg0: i32) -> (i32, i32) {
    %c0_i32 = arith.constant 0 : i32
    %c0_i32_0 = arith.constant 0 : i32
    %c0_i32_1 = arith.constant 0 : i32
    return %c0_i32, %c0_i32_0 : i32, i32
  }
  func.func @transform_3(%arg0: i32) -> (i32, i32) {
    %c0_i32 = arith.constant 0 : i32
    %c0_i32_0 = arith.constant 0 : i32
    %c0_i32_1 = arith.constant 0 : i32
    return %c0_i32, %c0_i32_0 : i32, i32
  }
  func.func @transform_4(%arg0: i32) -> (i32, i32) {
    %c0_i32 = arith.constant 0 : i32
    %c0_i32_0 = arith.constant 0 : i32
    %c0_i32_1 = arith.constant 0 : i32
    return %c0_i32, %c0_i32_0 : i32, i32
  }
  func.func @transform_5(%arg0: i32) -> (i32, i32) {
    %c0_i32 = arith.constant 0 : i32
    %c0_i32_0 = arith.constant 0 : i32
    return %arg0, %c0_i32 : i32, i32
  }
}

</mosaic_0001>

<llo_original>
// kernel: feed_forward.1
$region0: #{feed_forward.1}
  #allocation0 [shape = 'u32[]', space=smem, size = 0x4, offset = 0x4, fixed_abs, tag = 'smem constant byte address 0x4 - core index']
  #allocation1 [shape = 'u32[144,128]{1,0:T(1,128)}', space=vmem, size = 0x12000, scoped, tag = 'internal scratch']
  %s0 = inlined_call_operand.vmem [shape: f32[16,128], index: 0, kind: input, shape index: {}]
  %s1 = inlined_call_operand.vmem [shape: bf16[128,512], index: 1, kind: input, shape index: {}]
  %s2 = inlined_call_operand.vmem [shape: f32[1,512], index: 2, kind: input, shape index: {}]
  %s3 = inlined_call_operand.vmem [shape: bf16[512,128], index: 3, kind: input, shape index: {}]
  %s4 = inlined_call_operand.vmem [shape: f32[1,128], index: 4, kind: input, shape index: {}]
  %s5 = inlined_call_operand.hbm [shape: f32[16,128], index: 5, kind: output, shape index: {}]
  %s6 = sld [smem:[#allocation0]]
  $region53: #{feed_forward.1} parent=0
    _
  %s8 = ssub.s32 1, %s6
  %s9 = scalar_select 0, %s8, %s6
  $region1: #{feed_forward.1} parent=0
    #allocation2 [shape = 'u8[8192]{0}', space=vmem, size = 0x2000, scoped, tag = 'output window, operand 0']
    #allocation3 [shape = 's32[2]{0}', space=sflag, size = 0x8, scoped, tag = 'scoped memory for feed_forward.1']
    %10 = vsyncpa [#allocation3], 0
    %s11 = scalar_lea.sflag [#allocation3], 1
    %12 = vsyncpa %s11, 0
    loop: start=0, step=1, limit=4
    $region2: #{feed_forward.1} parent=1 // loop_pre_header
      _
    $region3: #{feed_forward.1} parent=1 // loop_header
      %s14 = sphi 0, %s18
      %p15 = scmp.ge.s32.totalorder %s14, 4
      %s24 = sphi 0, %s26
      %s27 = sphi 0, %s24
      %s28 = sphi 0, %s27
      %s44 = sphi 0, %s28
      %s48 = sphi 0, %s48
      %s50 = sphi 0, %s48
      %s51 = sphi 0, %s50
      %s65 = sphi 0, %s51
      %s69 = sphi 0, %s69
      %s71 = sphi 0, %s69
      %s72 = sphi 0, %s71
      %s86 = sphi 0, %s72
      %s90 = sphi 0, %s90
      %s92 = sphi 0, %s90
      %s93 = sphi 0, %s92
      %s107 = sphi 0, %s93
      %s111 = sphi 0, %s111
      %s113 = sphi 0, %s111
      %s114 = sphi 0, %s113
      %s128 = sphi 0, %s114
      %s134 = sphi 0, %s136
      %s137 = sphi 0, %s134
      %s138 = sphi 0, %s137
      %s154 = sphi 0, %s138
    $region4: #{feed_forward.1} parent=1 // loop_header_branch
      %17 = sbr.rel (%p15) target = $region8
    $region5: #{feed_forward.1} parent=1 // loop_body
      %s19 = ssub.s32 %s14, 1
      %s20 = ssub.s32 %s14, 2
      %s21 = sadd.s32 %s14, 1
      %s22 = ssub.s32 %s14, %s21
      %p23 = scmp.eq.s32.totalorder %s22, 0
      %s25 = sadd.s32 %s24, 1
      %s26 = scalar_select %p23, %s24, %s25
      %p29 = pneg %p23
      %p30 = scmp.eq.s32.totalorder %s14, 1
      %p31 = por %p29, %p30
      %p32 = scmp.ne.s32.totalorder %s24, %s27
      %p33 = scmp.eq.s32.totalorder %s14, 0
      %p34 = por %p32, %p33
      %p35 = scmp.ne.s32.totalorder %s24, %s27
      %p36 = scmp.eq.s32.totalorder %s19, 1
      %p37 = por %p35, %p36
      %p38 = scmp.ne.s32.totalorder %s27, %s28
      %p39 = scmp.eq.s32.totalorder %s19, 0
      %p40 = por %p38, %p39
      %p41 = scmp.ne.s32.totalorder %s27, %s28
      %p42 = scmp.eq.s32.totalorder %s20, 1
      %p43 = por %p41, %p42
      %p45 = scmp.ne.s32.totalorder %s28, %s44
      %p46 = scmp.eq.s32.totalorder %s20, 0
      %p47 = por %p45, %p46
      %s49 = sadd.s32 %s48, 1
      %p52 = scmp.eq.s32.totalorder %s14, 1
      %p53 = scmp.ne.s32.totalorder %s48, %s50
      %p54 = scmp.eq.s32.totalorder %s14, 0
      %p55 = por %p53, %p54
      %p56 = scmp.ne.s32.totalorder %s48, %s50
      %p57 = scmp.eq.s32.totalorder %s19, 1
      %p58 = por %p56, %p57
      %p59 = scmp.ne.s32.totalorder %s50, %s51
      %p60 = scmp.eq.s32.totalorder %s19, 0
      %p61 = por %p59, %p60
      %p62 = scmp.ne.s32.totalorder %s50, %s51
      %p63 = scmp.eq.s32.totalorder %s20, 1
      %p64 = por %p62, %p63
      %p66 = scmp.ne.s32.totalorder %s51, %s65
      %p67 = scmp.eq.s32.totalorder %s20, 0
      %p68 = por %p66, %p67
      %s70 = sadd.s32 %s69, 1
      %p73 = scmp.eq.s32.totalorder %s14, 1
      %p74 = scmp.ne.s32.totalorder %s69, %s71
      %p75 = scmp.eq.s32.totalorder %s14, 0
      %p76 = por %p74, %p75
      %p77 = scmp.ne.s32.totalorder %s69, %s71
      %p78 = scmp.eq.s32.totalorder %s19, 1
      %p79 = por %p77, %p78
      %p80 = scmp.ne.s32.totalorder %s71, %s72
      %p81 = scmp.eq.s32.totalorder %s19, 0
      %p82 = por %p80, %p81
      %p83 = scmp.ne.s32.totalorder %s71, %s72
      %p84 = scmp.eq.s32.totalorder %s20, 1
      %p85 = por %p83, %p84
      %p87 = scmp.ne.s32.totalorder %s72, %s86
      %p88 = scmp.eq.s32.totalorder %s20, 0
      %p89 = por %p87, %p88
      %s91 = sadd.s32 %s90, 1
      %p94 = scmp.eq.s32.totalorder %s14, 1
      %p95 = scmp.ne.s32.totalorder %s90, %s92
      %p96 = scmp.eq.s32.totalorder %s14, 0
      %p97 = por %p95, %p96
      %p98 = scmp.ne.s32.totalorder %s90, %s92
      %p99 = scmp.eq.s32.totalorder %s19, 1
      %p100 = por %p98, %p99
      %p101 = scmp.ne.s32.totalorder %s92, %s93
      %p102 = scmp.eq.s32.totalorder %s19, 0
      %p103 = por %p101, %p102
      %p104 = scmp.ne.s32.totalorder %s92, %s93
      %p105 = scmp.eq.s32.totalorder %s20, 1
      %p106 = por %p104, %p105
      %p108 = scmp.ne.s32.totalorder %s93, %s107
      %p109 = scmp.eq.s32.totalorder %s20, 0
      %p110 = por %p108, %p109
      %s112 = sadd.s32 %s111, 1
      %p115 = scmp.eq.s32.totalorder %s14, 1
      %p116 = scmp.ne.s32.totalorder %s111, %s113
      %p117 = scmp.eq.s32.totalorder %s14, 0
      %p118 = por %p116, %p117
      %p119 = scmp.ne.s32.totalorder %s111, %s113
      %p120 = scmp.eq.s32.totalorder %s19, 1
      %p121 = por %p119, %p120
      %p122 = scmp.ne.s32.totalorder %s113, %s114
      %p123 = scmp.eq.s32.totalorder %s19, 0
      %p124 = por %p122, %p123
      %p125 = scmp.ne.s32.totalorder %s113, %s114
      %p126 = scmp.eq.s32.totalorder %s20, 1
      %p127 = por %p125, %p126
      %p129 = scmp.ne.s32.totalorder %s114, %s128
      %p130 = scmp.eq.s32.totalorder %s20, 0
      %p131 = por %p129, %p130
      %s132 = ssub.s32 %s14, %s21
      %p133 = scmp.eq.s32.totalorder %s132, 0
      %s135 = sadd.s32 %s134, 1
      %s136 = scalar_select %p133, %s134, %s135
      %p139 = pneg %p133
      %p140 = scmp.eq.s32.totalorder %s14, 1
      %p141 = por %p139, %p140
      %p142 = scmp.ne.s32.totalorder %s134, %s137
      %p143 = scmp.eq.s32.totalorder %s14, 0
      %p144 = por %p142, %p143
      %p145 = scmp.ne.s32.totalorder %s134, %s137
      %p146 = scmp.eq.s32.totalorder %s19, 1
      %p147 = por %p145, %p146
      %p148 = scmp.ne.s32.totalorder %s137, %s138
      %p149 = scmp.eq.s32.totalorder %s19, 0
      %p150 = por %p148, %p149
      %p151 = scmp.ne.s32.totalorder %s137, %s138
      %p152 = scmp.eq.s32.totalorder %s20, 1
      %p153 = por %p151, %p152
      %p155 = scmp.ne.s32.totalorder %s138, %s154
      %p156 = scmp.eq.s32.totalorder %s20, 0
      %p157 = por %p155, %p156
      %p158 = scmp.le.s32.totalorder 1, %s14
      %p159 = scmp.lt.s32.totalorder %s14, 3
      %p160 = pnand %p158, %p159
      %p161 = pneg %p160
      // Predicated region
      $region9: #{feed_forward.1} parent=5 // pred_check
        _
      $region10: #{feed_forward.1} parent=5 // pred_check_branch
        %163 = sbr.rel (%p160) target = $region12
      $region11: #{feed_forward.1} parent=5 // pred_region
        %s164 = ssub.s32 %s14, 1
        // Predicated region
        $region13: #{feed_forward.1} parent=11 // pred_check
          %p165 = pneg %p61
        $region14: #{feed_forward.1} parent=11 // pred_check_branch
          %167 = sbr.rel (%p165) target = $region16
        $region15: #{feed_forward.1} parent=11 // pred_region
          _
        $region16: #{feed_forward.1} parent=11 // pred_fallthru
          _
        // Predicated region
        $region17: #{feed_forward.1} parent=11 // pred_check
          %p168 = pneg %p82
        $region18: #{feed_forward.1} parent=11 // pred_check_branch
          %170 = sbr.rel (%p168) target = $region20
        $region19: #{feed_forward.1} parent=11 // pred_region
          _
        $region20: #{feed_forward.1} parent=11 // pred_fallthru
          _
        // Predicated region
        $region21: #{feed_forward.1} parent=11 // pred_check
          %p171 = pneg %p103
        $region22: #{feed_forward.1} parent=11 // pred_check_branch
          %173 = sbr.rel (%p171) target = $region24
        $region23: #{feed_forward.1} parent=11 // pred_region
          _
        $region24: #{feed_forward.1} parent=11 // pred_fallthru
          _
        // Predicated region
        $region25: #{feed_forward.1} parent=11 // pred_check
          %p174 = pneg %p124
        $region26: #{feed_forward.1} parent=11 // pred_check_branch
          %176 = sbr.rel (%p174) target = $region28
        $region27: #{feed_forward.1} parent=11 // pred_region
          _
        $region28: #{feed_forward.1} parent=11 // pred_fallthru
          _
      $region12: #{feed_forward.1} parent=5 // pred_fallthru
        _
      %p177 = scmp.lt.s32.totalorder %s14, 2
      // Predicated region
      $region29: #{feed_forward.1} parent=5 // pred_check
        %p178 = pneg %p177
      $region30: #{feed_forward.1} parent=5 // pred_check_branch
        %180 = sbr.rel (%p178) target = $region32
      $region31: #{feed_forward.1} parent=5 // pred_region
        // Predicated region
        $region33: #{feed_forward.1} parent=31 // pred_check
          %p181 = pneg %p34
        $region34: #{feed_forward.1} parent=31 // pred_check_branch
          %183 = sbr.rel (%p181) target = $region36
        $region35: #{feed_forward.1} parent=31 // pred_region
          %p184 = scmp.lt.s32.totalorder %s14, 1
          %s185 = scalar_select %p184, %s14, 1
          %s186 = smul.addr %s185, 8
          %s187 = scalar_lea.vmem %s0, %s186
        $region36: #{feed_forward.1} parent=31 // pred_fallthru
          _
      $region32: #{feed_forward.1} parent=5 // pred_fallthru
        _
      %p188 = scmp.le.s32.totalorder 1, %s14
      %p189 = scmp.lt.s32.totalorder %s14, 3
      %p190 = pnand %p188, %p189
      %p191 = pneg %p190
      // Predicated region
      $region37: #{feed_forward.1} parent=5 // pred_check
        _
      $region38: #{feed_forward.1} parent=5 // pred_check_branch
        %193 = sbr.rel (%p190) target = $region40
      $region39: #{feed_forward.1} parent=5 // pred_region
        %s194 = ssub.s32 %s14, 1
        %p195 = scmp.lt.s32.totalorder %s19, 1
        %s196 = scalar_select %p195, %s19, 1
        %s197 = smul.addr %s196, 8
        %s198 = scalar_lea.vmem %s0, %s197
        %p199 = pneg %p40
        %p200 = pneg %p37
        %p201 = pneg %p61
        %p202 = pneg %p58
        %p203 = pneg %p82
        %p204 = pneg %p79
        %p205 = pneg %p103
        %p206 = pneg %p100
        %p207 = pneg %p124
        %p208 = pneg %p121
        %p209 = pneg %p150
        %p210 = pneg %p147
        %s211 = sand.u32 %s137, 1
        %s212 = scalar_lea.sflag [#allocation3], %s211
        %s213 = sand.u32 %s137, 1
        %s214 = smul.addr %s213, 8
        %s215 = scalar_lea.vmem [#allocation2], %s214
        %p216 = scmp.lt.s32.totalorder %s19, 1
        %s217 = scalar_select %p216, %s19, 1
        %s218 = smul.addr %s217, 8
        %s219 = scalar_lea.vmem %s0, %s218
        %v221 = vld [vmem:[%s219] sm:$0xff]
        %v222 = vpack.c.bf16 %v221, %v221
        %v223 = vld [vmem:[%s1] sm:$0xff]
        %v224 = vld [vmem:[%s1 + $0x8] sm:$0xff]
        %v225 = vld [vmem:[%s1 + $0x10] sm:$0xff]
        %v226 = vld [vmem:[%s1 + $0x18] sm:$0xff]
        %v227 = vld [vmem:[%s1 + $0x20] sm:$0xff]
        %v228 = vld [vmem:[%s1 + $0x28] sm:$0xff]
        %v229 = vld [vmem:[%s1 + $0x30] sm:$0xff]
        %v230 = vld [vmem:[%s1 + $0x38] sm:$0xff]
        %v231 = vld [vmem:[%s1 + $0x40] sm:$0xff]
        %v232 = vld [vmem:[%s1 + $0x48] sm:$0xff]
        %v233 = vld [vmem:[%s1 + $0x50] sm:$0xff]
        %v234 = vld [vmem:[%s1 + $0x58] sm:$0xff]
        %v235 = vld [vmem:[%s1 + $0x60] sm:$0xff]
        %v236 = vld [vmem:[%s1 + $0x68] sm:$0xff]
        %v237 = vld [vmem:[%s1 + $0x70] sm:$0xff]
        %v238 = vld [vmem:[%s1 + $0x78] sm:$0xff]
        %v239 = vld [vmem:[%s1 + $0x80] sm:$0xff]
        %v240 = vld [vmem:[%s1 + $0x88] sm:$0xff]
        %v241 = vld [vmem:[%s1 + $0x90] sm:$0xff]
        %v242 = vld [vmem:[%s1 + $0x98] sm:$0xff]
        %v243 = vld [vmem:[%s1 + $0xa0] sm:$0xff]
        %v244 = vld [vmem:[%s1 + $0xa8] sm:$0xff]
        %v245 = vld [vmem:[%s1 + $0xb0] sm:$0xff]
        %v246 = vld [vmem:[%s1 + $0xb8] sm:$0xff]
        %v247 = vld [vmem:[%s1 + $0xc0] sm:$0xff]
        %v248 = vld [vmem:[%s1 + $0xc8] sm:$0xff]
        %v249 = vld [vmem:[%s1 + $0xd0] sm:$0xff]
        %v250 = vld [vmem:[%s1 + $0xd8] sm:$0xff]
        %v251 = vld [vmem:[%s1 + $0xe0] sm:$0xff]
        %v252 = vld [vmem:[%s1 + $0xe8] sm:$0xff]
        %v253 = vld [vmem:[%s1 + $0xf0] sm:$0xff]
        %v254 = vld [vmem:[%s1 + $0xf8] sm:$0xff]
        %v255 = vld [vmem:[%s2] sm:$0xf]
        %v257 = vlaneseq
        %v258 = vshrl.u32 %v257, 7
        %v259 = vsub.s32 0, %v258
        %v260 = vrot.slane %v255, %v259
        %v261 = vlaneseq
        %v262 = vshrl.u32 %v261, 7
        %v263 = vsub.s32 1, %v262
        %v264 = vrot.slane %v255, %v263
        %v265 = vlaneseq
        %v266 = vshrl.u32 %v265, 7
        %v267 = vsub.s32 2, %v266
        %v268 = vrot.slane %v255, %v267
        %v269 = vlaneseq
        %v270 = vshrl.u32 %v269, 7
        %v271 = vsub.s32 3, %v270
        %v272 = vrot.slane %v255, %v271
        %v309 = vunpack.c.l.b16 %v223
        %v310 = vunpack.c.h.b16 %v223
        %v311 = vunpack.c.l.b16 %v224
        %v312 = vunpack.c.h.b16 %v224
        %v313 = vunpack.c.l.b16 %v225
        %v314 = vunpack.c.h.b16 %v225
        %v315 = vunpack.c.l.b16 %v226
        %v316 = vunpack.c.h.b16 %v226
        %v317 = vunpack.c.l.b16 %v227
        %v318 = vunpack.c.h.b16 %v227
        %v319 = vunpack.c.l.b16 %v228
        %v320 = vunpack.c.h.b16 %v228
        %v321 = vunpack.c.l.b16 %v229
        %v322 = vunpack.c.h.b16 %v229
        %v323 = vunpack.c.l.b16 %v230
        %v324 = vunpack.c.h.b16 %v230
        %v325 = vunpack.c.l.b16 %v231
        %v326 = vunpack.c.h.b16 %v231
        %v327 = vunpack.c.l.b16 %v232
        %v328 = vunpack.c.h.b16 %v232
        %v329 = vunpack.c.l.b16 %v233
        %v330 = vunpack.c.h.b16 %v233
        %v331 = vunpack.c.l.b16 %v234
        %v332 = vunpack.c.h.b16 %v234
        %v333 = vunpack.c.l.b16 %v235
        %v334 = vunpack.c.h.b16 %v235
        %v335 = vunpack.c.l.b16 %v236
        %v336 = vunpack.c.h.b16 %v236
        %v337 = vunpack.c.l.b16 %v237
        %v338 = vunpack.c.h.b16 %v237
        %v339 = vunpack.c.l.b16 %v238
        %v340 = vunpack.c.h.b16 %v238
        %v341 = vunpack.c.l.b16 %v239
        %v342 = vunpack.c.h.b16 %v239
        %v343 = vunpack.c.l.b16 %v240
        %v344 = vunpack.c.h.b16 %v240
        %v345 = vunpack.c.l.b16 %v241
        %v346 = vunpack.c.h.b16 %v241
        %v347 = vunpack.c.l.b16 %v242
        %v348 = vunpack.c.h.b16 %v242
        %v349 = vunpack.c.l.b16 %v243
        %v350 = vunpack.c.h.b16 %v243
        %v351 = vunpack.c.l.b16 %v244
        %v352 = vunpack.c.h.b16 %v244
        %v353 = vunpack.c.l.b16 %v245
        %v354 = vunpack.c.h.b16 %v245
        %v355 = vunpack.c.l.b16 %v246
        %v356 = vunpack.c.h.b16 %v246
        %v357 = vunpack.c.l.b16 %v247
        %v358 = vunpack.c.h.b16 %v247
        %v359 = vunpack.c.l.b16 %v248
        %v360 = vunpack.c.h.b16 %v248
        %v361 = vunpack.c.l.b16 %v249
        %v362 = vunpack.c.h.b16 %v249
        %v363 = vunpack.c.l.b16 %v250
        %v364 = vunpack.c.h.b16 %v250
        %v365 = vunpack.c.l.b16 %v251
        %v366 = vunpack.c.h.b16 %v251
        %v367 = vunpack.c.l.b16 %v252
        %v368 = vunpack.c.h.b16 %v252
        %v369 = vunpack.c.l.b16 %v253
        %v370 = vunpack.c.h.b16 %v253
        %v371 = vunpack.c.l.b16 %v254
        %v372 = vunpack.c.h.b16 %v254
        %v373 = vpack.c.b16 %v313, %v309
        %v374 = vpack.c.b16 %v314, %v310
        %v375 = vpack.c.b16 %v315, %v311
        %v376 = vpack.c.b16 %v316, %v312
        %v377 = vpack.c.b16 %v321, %v317
        %v378 = vpack.c.b16 %v322, %v318
        %v379 = vpack.c.b16 %v323, %v319
        %v380 = vpack.c.b16 %v324, %v320
        %v381 = vpack.c.b16 %v329, %v325
        %v382 = vpack.c.b16 %v330, %v326
        %v383 = vpack.c.b16 %v331, %v327
        %v384 = vpack.c.b16 %v332, %v328
        %v385 = vpack.c.b16 %v337, %v333
        %v386 = vpack.c.b16 %v338, %v334
        %v387 = vpack.c.b16 %v339, %v335
        %v388 = vpack.c.b16 %v340, %v336
        %v389 = vpack.c.b16 %v345, %v341
        %v390 = vpack.c.b16 %v346, %v342
        %v391 = vpack.c.b16 %v347, %v343
        %v392 = vpack.c.b16 %v348, %v344
        %v393 = vpack.c.b16 %v353, %v349
        %v394 = vpack.c.b16 %v354, %v350
        %v395 = vpack.c.b16 %v355, %v351
        %v396 = vpack.c.b16 %v356, %v352
        %v397 = vpack.c.b16 %v361, %v357
        %v398 = vpack.c.b16 %v362, %v358
        %v399 = vpack.c.b16 %v363, %v359
        %v400 = vpack.c.b16 %v364, %v360
        %v401 = vpack.c.b16 %v369, %v365
        %v402 = vpack.c.b16 %v370, %v366
        %v403 = vpack.c.b16 %v371, %v367
        %v404 = vpack.c.b16 %v372, %v368
        %437 = vmatprep.subr.bf16.mxu0 %v374
        %438 = vmatpush1.bf16.msra.mxu0 %v373
        %439 = vmatprep.subr.bf16.mxu0 %v378
        %440 = vmatpush1.bf16.msra.mxu0 %v377
        %441 = vmatprep.subr.bf16.mxu0 %v382
        %442 = vmatpush1.bf16.msra.mxu0 %v381
        %443 = vmatprep.subr.bf16.mxu0 %v386
        %444 = vmatpush1.bf16.msra.mxu0 %v385
        %445 = vmatprep.subr.bf16.mxu0 %v390
        %446 = vmatpush1.bf16.msra.mxu0 %v389
        %447 = vmatprep.subr.bf16.mxu0 %v394
        %448 = vmatpush1.bf16.msra.mxu0 %v393
        %449 = vmatprep.subr.bf16.mxu0 %v398
        %450 = vmatpush1.bf16.msra.mxu0 %v397
        %451 = vmatprep.subr.bf16.mxu0 %v402
        %452 = vmatpush1.bf16.msra.mxu0 %v401
        %453 = vmatprep.subr.bf16.mxu0 0
        %454 = vmatpush1.bf16.msra.mxu0 0
        %455 = vmatprep.subr.bf16.mxu0 0
        %456 = vmatpush1.bf16.msra.mxu0 0
        %457 = vmatprep.subr.bf16.mxu0 0
        %458 = vmatpush1.bf16.msra.mxu0 0
        %459 = vmatprep.subr.bf16.mxu0 0
        %460 = vmatpush1.bf16.msra.mxu0 0
        %461 = vmatprep.subr.bf16.mxu0 0
        %462 = vmatpush1.bf16.msra.mxu0 0
        %463 = vmatprep.subr.bf16.mxu0 0
        %464 = vmatpush1.bf16.msra.mxu0 0
        %465 = vmatprep.subr.bf16.mxu0 0
        %466 = vmatpush1.bf16.msra.mxu0 0
        %467 = vmatprep.subr.bf16.mxu0 0
        %468 = vmatpush1.bf16.msra.mxu0 0
        %469 = vmatprep.mubr.bf16.mxu0 0
        %470 = vmatmul.mubr.bf16.gmra.mrb[0].mxu0 %v222
        %v471 = vpop.f32.mrb[0].mxu0
        %v472 = vadd.f32 %v260, %v471
        %v473 = vpop.f32.mrb[0].mxu0
        %v474 = vadd.f32 %v264, %v473
        %v475 = vpop.f32.mrb[0].mxu0
        %v476 = vpop.f32.mrb[0].mxu0
        %477 = vdwg.mxu0
        %478 = vmatprep.subr.bf16.mxu0 %v376
        %479 = vmatpush1.bf16.msra.mxu0 %v375
        %480 = vmatprep.subr.bf16.mxu0 %v380
        %481 = vmatpush1.bf16.msra.mxu0 %v379
        %482 = vmatprep.subr.bf16.mxu0 %v384
        %483 = vmatpush1.bf16.msra.mxu0 %v383
        %484 = vmatprep.subr.bf16.mxu0 %v388
        %485 = vmatpush1.bf16.msra.mxu0 %v387
        %486 = vmatprep.subr.bf16.mxu0 %v392
        %487 = vmatpush1.bf16.msra.mxu0 %v391
        %488 = vmatprep.subr.bf16.mxu0 %v396
        %489 = vmatpush1.bf16.msra.mxu0 %v395
        %490 = vmatprep.subr.bf16.mxu0 %v400
        %491 = vmatpush1.bf16.msra.mxu0 %v399
        %492 = vmatprep.subr.bf16.mxu0 %v404
        %493 = vmatpush1.bf16.msra.mxu0 %v403
        %494 = vmatprep.subr.bf16.mxu0 0
        %495 = vmatpush1.bf16.msra.mxu0 0
        %496 = vmatprep.subr.bf16.mxu0 0
        %497 = vmatpush1.bf16.msra.mxu0 0
        %498 = vmatprep.subr.bf16.mxu0 0
        %499 = vmatpush1.bf16.msra.mxu0 0
        %500 = vmatprep.subr.bf16.mxu0 0
        %501 = vmatpush1.bf16.msra.mxu0 0
        %502 = vmatprep.subr.bf16.mxu0 0
        %503 = vmatpush1.bf16.msra.mxu0 0
        %504 = vmatprep.subr.bf16.mxu0 0
        %505 = vmatpush1.bf16.msra.mxu0 0
        %506 = vmatprep.subr.bf16.mxu0 0
        %507 = vmatpush1.bf16.msra.mxu0 0
        %508 = vmatprep.subr.bf16.mxu0 0
        %509 = vmatpush1.bf16.msra.mxu0 0
        %510 = vmatprep.mubr.bf16.mxu0 0
        %511 = vmatmul.mubr.bf16.gmra.mrb[0].mxu0 %v222
        %v512 = vpop.f32.mrb[0].mxu0
        %v513 = vadd.f32 %v268, %v512
        %v514 = vpop.f32.mrb[0].mxu0
        %v515 = vadd.f32 %v272, %v514
        %v516 = vpop.f32.mrb[0].mxu0
        %v517 = vpop.f32.mrb[0].mxu0
        %518 = vdwg.mxu0
        %v519 = vmul.f32 %v472, 0.5
        %v520 = vmul.f32 %v474, 0.5
        %v521 = vmul.f32 %v513, 0.5
        %v522 = vmul.f32 %v515, 0.5
        %v523 = vmul.f32 %v472, 0.044715
        %v524 = vmul.f32 %v474, 0.044715
        %v525 = vmul.f32 %v513, 0.044715
        %v526 = vmul.f32 %v515, 0.044715
        %v527 = vmul.f32 %v523, %v472
        %v528 = vmul.f32 %v524, %v474
        %v529 = vmul.f32 %v525, %v513
        %v530 = vmul.f32 %v526, %v515
        %v531 = vmul.f32 %v527, %v472
        %v532 = vmul.f32 %v528, %v474
        %v533 = vmul.f32 %v529, %v513
        %v534 = vmul.f32 %v530, %v515
        %v535 = vadd.f32 %v472, %v531
        %v536 = vadd.f32 %v474, %v532
        %v537 = vadd.f32 %v513, %v533
        %v538 = vadd.f32 %v515, %v534
        %v539 = vmul.f32 %v535, 0.7978846
        %v540 = vmul.f32 %v536, 0.7978846
        %v541 = vmul.f32 %v537, 0.7978846
        %v542 = vmul.f32 %v538, 0.7978846
        %v543 = vtanh.pop %v539
        %v544 = vtanh.pop %v540
        %v545 = vtanh.pop %v541
        %v546 = vtanh.pop %v542
        %v547 = vadd.f32 %v543, 1.0
        %v548 = vadd.f32 %v544, 1.0
        %v549 = vadd.f32 %v545, 1.0
        %v550 = vadd.f32 %v546, 1.0
        %v551 = vmul.f32 %v519, %v547
        %v552 = vmul.f32 %v520, %v548
        %v553 = vmul.f32 %v521, %v549
        %v554 = vmul.f32 %v522, %v550
        %v555 = vpack.c.bf16 %v551, %v551
        %v556 = vpack.c.bf16 %v552, %v552
        %v557 = vpack.c.bf16 %v553, %v553
        %v558 = vpack.c.bf16 %v554, %v554
        %v559 = vld [vmem:[%s3] sm:$0xf]
        %v560 = vld [vmem:[%s3 + $0x4] sm:$0xf]
        %v561 = vld [vmem:[%s3 + $0x8] sm:$0xf]
        %v562 = vld [vmem:[%s3 + $0xc] sm:$0xf]
        %v563 = vld [vmem:[%s3 + $0x10] sm:$0xf]
        %v564 = vld [vmem:[%s3 + $0x14] sm:$0xf]
        %v565 = vld [vmem:[%s3 + $0x18] sm:$0xf]
        %v566 = vld [vmem:[%s3 + $0x1c] sm:$0xf]
        %v567 = vld [vmem:[%s3 + $0x20] sm:$0xf]
        %v568 = vld [vmem:[%s3 + $0x24] sm:$0xf]
        %v569 = vld [vmem:[%s3 + $0x28] sm:$0xf]
        %v570 = vld [vmem:[%s3 + $0x2c] sm:$0xf]
        %v571 = vld [vmem:[%s3 + $0x30] sm:$0xf]
        %v572 = vld [vmem:[%s3 + $0x34] sm:$0xf]
        %v573 = vld [vmem:[%s3 + $0x38] sm:$0xf]
        %v574 = vld [vmem:[%s3 + $0x3c] sm:$0xf]
        %v575 = vld [vmem:[%s3 + $0x40] sm:$0xf]
        %v576 = vld [vmem:[%s3 + $0x44] sm:$0xf]
        %v577 = vld [vmem:[%s3 + $0x48] sm:$0xf]
        %v578 = vld [vmem:[%s3 + $0x4c] sm:$0xf]
        %v579 = vld [vmem:[%s3 + $0x50] sm:$0xf]
        %v580 = vld [vmem:[%s3 + $0x54] sm:$0xf]
        %v581 = vld [vmem:[%s3 + $0x58] sm:$0xf]
        %v582 = vld [vmem:[%s3 + $0x5c] sm:$0xf]
        %v583 = vld [vmem:[%s3 + $0x60] sm:$0xf]
        %v584 = vld [vmem:[%s3 + $0x64] sm:$0xf]
        %v585 = vld [vmem:[%s3 + $0x68] sm:$0xf]
        %v586 = vld [vmem:[%s3 + $0x6c] sm:$0xf]
        %v587 = vld [vmem:[%s3 + $0x70] sm:$0xf]
        %v588 = vld [vmem:[%s3 + $0x74] sm:$0xf]
        %v589 = vld [vmem:[%s3 + $0x78] sm:$0xf]
        %v590 = vld [vmem:[%s3 + $0x7c] sm:$0xf]
        %v591 = vld [vmem:[%s3 + $0x80] sm:$0xf]
        %v592 = vld [vmem:[%s3 + $0x84] sm:$0xf]
        %v593 = vld [vmem:[%s3 + $0x88] sm:$0xf]
        %v594 = vld [vmem:[%s3 + $0x8c] sm:$0xf]
        %v595 = vld [vmem:[%s3 + $0x90] sm:$0xf]
        %v596 = vld [vmem:[%s3 + $0x94] sm:$0xf]
        %v597 = vld [vmem:[%s3 + $0x98] sm:$0xf]
        %v598 = vld [vmem:[%s3 + $0x9c] sm:$0xf]
        %v599 = vld [vmem:[%s3 + $0xa0] sm:$0xf]
        %v600 = vld [vmem:[%s3 + $0xa4] sm:$0xf]
        %v601 = vld [vmem:[%s3 + $0xa8] sm:$0xf]
        %v602 = vld [vmem:[%s3 + $0xac] sm:$0xf]
        %v603 = vld [vmem:[%s3 + $0xb0] sm:$0xf]
        %v604 = vld [vmem:[%s3 + $0xb4] sm:$0xf]
        %v605 = vld [vmem:[%s3 + $0xb8] sm:$0xf]
        %v606 = vld [vmem:[%s3 + $0xbc] sm:$0xf]
        %v607 = vld [vmem:[%s3 + $0xc0] sm:$0xf]
        %v608 = vld [vmem:[%s3 + $0xc4] sm:$0xf]
        %v609 = vld [vmem:[%s3 + $0xc8] sm:$0xf]
        %v610 = vld [vmem:[%s3 + $0xcc] sm:$0xf]
        %v611 = vld [vmem:[%s3 + $0xd0] sm:$0xf]
        %v612 = vld [vmem:[%s3 + $0xd4] sm:$0xf]
        %v613 = vld [vmem:[%s3 + $0xd8] sm:$0xf]
        %v614 = vld [vmem:[%s3 + $0xdc] sm:$0xf]
        %v615 = vld [vmem:[%s3 + $0xe0] sm:$0xf]
        %v616 = vld [vmem:[%s3 + $0xe4] sm:$0xf]
        %v617 = vld [vmem:[%s3 + $0xe8] sm:$0xf]
        %v618 = vld [vmem:[%s3 + $0xec] sm:$0xf]
        %v619 = vld [vmem:[%s3 + $0xf0] sm:$0xf]
        %v620 = vld [vmem:[%s3 + $0xf4] sm:$0xf]
        %v621 = vld [vmem:[%s3 + $0xf8] sm:$0xf]
        %v622 = vld [vmem:[%s3 + $0xfc] sm:$0xf]
        %v623 = vld [vmem:[%s4] sm:$0x1]
        %v625 = vlaneseq
        %v626 = vshrl.u32 %v625, 7
        %v627 = vsub.s32 0, %v626
        %v628 = vrot.slane %v623, %v627
        %v694 = vunpack.c.l.b16 %v559
        %v695 = vunpack.c.l.b16 %v560
        %v696 = vunpack.c.l.b16 %v561
        %v697 = vunpack.c.l.b16 %v562
        %v698 = vunpack.c.l.b16 %v563
        %v699 = vunpack.c.l.b16 %v564
        %v700 = vunpack.c.l.b16 %v565
        %v701 = vunpack.c.l.b16 %v566
        %v702 = vunpack.c.l.b16 %v567
        %v703 = vunpack.c.l.b16 %v568
        %v704 = vunpack.c.l.b16 %v569
        %v705 = vunpack.c.l.b16 %v570
        %v706 = vunpack.c.l.b16 %v571
        %v707 = vunpack.c.l.b16 %v572
        %v708 = vunpack.c.l.b16 %v573
        %v709 = vunpack.c.l.b16 %v574
        %v710 = vunpack.c.l.b16 %v575
        %v711 = vunpack.c.l.b16 %v576
        %v712 = vunpack.c.l.b16 %v577
        %v713 = vunpack.c.l.b16 %v578
        %v714 = vunpack.c.l.b16 %v579
        %v715 = vunpack.c.l.b16 %v580
        %v716 = vunpack.c.l.b16 %v581
        %v717 = vunpack.c.l.b16 %v582
        %v718 = vunpack.c.l.b16 %v583
        %v719 = vunpack.c.l.b16 %v584
        %v720 = vunpack.c.l.b16 %v585
        %v721 = vunpack.c.l.b16 %v586
        %v722 = vunpack.c.l.b16 %v587
        %v723 = vunpack.c.l.b16 %v588
        %v724 = vunpack.c.l.b16 %v589
        %v725 = vunpack.c.l.b16 %v590
        %v726 = vunpack.c.l.b16 %v591
        %v727 = vunpack.c.l.b16 %v592
        %v728 = vunpack.c.l.b16 %v593
        %v729 = vunpack.c.l.b16 %v594
        %v730 = vunpack.c.l.b16 %v595
        %v731 = vunpack.c.l.b16 %v596
        %v732 = vunpack.c.l.b16 %v597
        %v733 = vunpack.c.l.b16 %v598
        %v734 = vunpack.c.l.b16 %v599
        %v735 = vunpack.c.l.b16 %v600
        %v736 = vunpack.c.l.b16 %v601
        %v737 = vunpack.c.l.b16 %v602
        %v738 = vunpack.c.l.b16 %v603
        %v739 = vunpack.c.l.b16 %v604
        %v740 = vunpack.c.l.b16 %v605
        %v741 = vunpack.c.l.b16 %v606
        %v742 = vunpack.c.l.b16 %v607
        %v743 = vunpack.c.l.b16 %v608
        %v744 = vunpack.c.l.b16 %v609
        %v745 = vunpack.c.l.b16 %v610
        %v746 = vunpack.c.l.b16 %v611
        %v747 = vunpack.c.l.b16 %v612
        %v748 = vunpack.c.l.b16 %v613
        %v749 = vunpack.c.l.b16 %v614
        %v750 = vunpack.c.l.b16 %v615
        %v751 = vunpack.c.l.b16 %v616
        %v752 = vunpack.c.l.b16 %v617
        %v753 = vunpack.c.l.b16 %v618
        %v754 = vunpack.c.l.b16 %v619
        %v755 = vunpack.c.l.b16 %v620
        %v756 = vunpack.c.l.b16 %v621
        %v757 = vunpack.c.l.b16 %v622
        %v758 = vpack.c.b16 %v695, %v694
        %v759 = vpack.c.b16 %v697, %v696
        %v760 = vpack.c.b16 %v699, %v698
        %v761 = vpack.c.b16 %v701, %v700
        %v762 = vpack.c.b16 %v703, %v702
        %v763 = vpack.c.b16 %v705, %v704
        %v764 = vpack.c.b16 %v707, %v706
        %v765 = vpack.c.b16 %v709, %v708
        %v766 = vpack.c.b16 %v711, %v710
        %v767 = vpack.c.b16 %v713, %v712
        %v768 = vpack.c.b16 %v715, %v714
        %v769 = vpack.c.b16 %v717, %v716
        %v770 = vpack.c.b16 %v719, %v718
        %v771 = vpack.c.b16 %v721, %v720
        %v772 = vpack.c.b16 %v723, %v722
        %v773 = vpack.c.b16 %v725, %v724
        %v774 = vpack.c.b16 %v727, %v726
        %v775 = vpack.c.b16 %v729, %v728
        %v776 = vpack.c.b16 %v731, %v730
        %v777 = vpack.c.b16 %v733, %v732
        %v778 = vpack.c.b16 %v735, %v734
        %v779 = vpack.c.b16 %v737, %v736
        %v780 = vpack.c.b16 %v739, %v738
        %v781 = vpack.c.b16 %v741, %v740
        %v782 = vpack.c.b16 %v743, %v742
        %v783 = vpack.c.b16 %v745, %v744
        %v784 = vpack.c.b16 %v747, %v746
        %v785 = vpack.c.b16 %v749, %v748
        %v786 = vpack.c.b16 %v751, %v750
        %v787 = vpack.c.b16 %v753, %v752
        %v788 = vpack.c.b16 %v755, %v754
        %v789 = vpack.c.b16 %v757, %v756
        %822 = vmatprep.subr.bf16.mxu0 0
        %823 = vmatpush1.bf16.msra.mxu0 %v758
        %824 = vmatprep.subr.bf16.mxu0 0
        %825 = vmatpush1.bf16.msra.mxu0 %v759
        %826 = vmatprep.subr.bf16.mxu0 0
        %827 = vmatpush1.bf16.msra.mxu0 %v760
        %828 = vmatprep.subr.bf16.mxu0 0
        %829 = vmatpush1.bf16.msra.mxu0 %v761
        %830 = vmatprep.subr.bf16.mxu0 0
        %831 = vmatpush1.bf16.msra.mxu0 %v762
        %832 = vmatprep.subr.bf16.mxu0 0
        %833 = vmatpush1.bf16.msra.mxu0 %v763
        %834 = vmatprep.subr.bf16.mxu0 0
        %835 = vmatpush1.bf16.msra.mxu0 %v764
        %836 = vmatprep.subr.bf16.mxu0 0
        %837 = vmatpush1.bf16.msra.mxu0 %v765
        %838 = vmatprep.subr.bf16.mxu0 0
        %839 = vmatpush1.bf16.msra.mxu0 %v766
        %840 = vmatprep.subr.bf16.mxu0 0
        %841 = vmatpush1.bf16.msra.mxu0 %v767
        %842 = vmatprep.subr.bf16.mxu0 0
        %843 = vmatpush1.bf16.msra.mxu0 %v768
        %844 = vmatprep.subr.bf16.mxu0 0
        %845 = vmatpush1.bf16.msra.mxu0 %v769
        %846 = vmatprep.subr.bf16.mxu0 0
        %847 = vmatpush1.bf16.msra.mxu0 %v770
        %848 = vmatprep.subr.bf16.mxu0 0
        %849 = vmatpush1.bf16.msra.mxu0 %v771
        %850 = vmatprep.subr.bf16.mxu0 0
        %851 = vmatpush1.bf16.msra.mxu0 %v772
        %852 = vmatprep.subr.bf16.mxu0 0
        %853 = vmatpush1.bf16.msra.mxu0 %v773
        %854 = vmatprep.mubr.bf16.mxu0 %v556
        %855 = vmatmul.mubr.bf16.gmra.mrb[0].mxu0 %v555
        %v856 = vpop.f32.mrb[0].mxu0
        %v857 = vadd.f32 %v628, %v856
        %v858 = vpop.f32.mrb[0].mxu0
        %v859 = vpop.f32.mrb[0].mxu0
        %v860 = vpop.f32.mrb[0].mxu0
        %861 = vdwg.mxu0
        %862 = vmatprep.subr.bf16.mxu0 0
        %863 = vmatpush1.bf16.msra.mxu0 %v774
        %864 = vmatprep.subr.bf16.mxu0 0
        %865 = vmatpush1.bf16.msra.mxu0 %v775
        %866 = vmatprep.subr.bf16.mxu0 0
        %867 = vmatpush1.bf16.msra.mxu0 %v776
        %868 = vmatprep.subr.bf16.mxu0 0
        %869 = vmatpush1.bf16.msra.mxu0 %v777
        %870 = vmatprep.subr.bf16.mxu0 0
        %871 = vmatpush1.bf16.msra.mxu0 %v778
        %872 = vmatprep.subr.bf16.mxu0 0
        %873 = vmatpush1.bf16.msra.mxu0 %v779
        %874 = vmatprep.subr.bf16.mxu0 0
        %875 = vmatpush1.bf16.msra.mxu0 %v780
        %876 = vmatprep.subr.bf16.mxu0 0
        %877 = vmatpush1.bf16.msra.mxu0 %v781
        %878 = vmatprep.subr.bf16.mxu0 0
        %879 = vmatpush1.bf16.msra.mxu0 %v782
        %880 = vmatprep.subr.bf16.mxu0 0
        %881 = vmatpush1.bf16.msra.mxu0 %v783
        %882 = vmatprep.subr.bf16.mxu0 0
        %883 = vmatpush1.bf16.msra.mxu0 %v784
        %884 = vmatprep.subr.bf16.mxu0 0
        %885 = vmatpush1.bf16.msra.mxu0 %v785
        %886 = vmatprep.subr.bf16.mxu0 0
        %887 = vmatpush1.bf16.msra.mxu0 %v786
        %888 = vmatprep.subr.bf16.mxu0 0
        %889 = vmatpush1.bf16.msra.mxu0 %v787
        %890 = vmatprep.subr.bf16.mxu0 0
        %891 = vmatpush1.bf16.msra.mxu0 %v788
        %892 = vmatprep.subr.bf16.mxu0 0
        %893 = vmatpush1.bf16.msra.mxu0 %v789
        %894 = vmatprep.mubr.bf16.mxu0 %v558
        %895 = vmatmul.mubr.bf16.gmra.mrb[0].mxu0 %v557
        %v896 = vpop.f32.mrb[0].mxu0
        %v897 = vadd.f32 %v857, %v896
        %v898 = vpop.f32.mrb[0].mxu0
        %v899 = vpop.f32.mrb[0].mxu0
        %v900 = vpop.f32.mrb[0].mxu0
        %901 = vdwg.mxu0
        %902 = vst [vmem:[%s215] sm:$0xff] %v897
        %s903 = sand.u32 %s137, 1
        %s904 = scalar_lea.sflag [#allocation3], %s903
        %s905 = sand.u32 %s137, 1
        %s906 = smul.addr %s905, 8
        %s907 = scalar_lea.vmem [#allocation2], %s906
        // Predicated region
        $region41: #{feed_forward.1} parent=39 // pred_check
          %p908 = pneg %p147
        $region42: #{feed_forward.1} parent=39 // pred_check_branch
          %910 = sbr.rel (%p908) target = $region44
        $region43: #{feed_forward.1} parent=39 // pred_region
          %s912 = ssub.s32 128, 128
          %913 = vsyncadd %s904, %s912
          %s914 = smul.addr %s19, 128
          %s915 = scalar_lea.hbm %s5, %s914
          %s917 = sshll.u32 %s907, 4
          %s918 = int_to_ptr.vmem [resolvable:$true] %s917
          %920 = dma.vmem_to_hbm [thread:$0]  %s918, 128, %s915, %s904
        $region44: #{feed_forward.1} parent=39 // pred_fallthru
          _
      $region40: #{feed_forward.1} parent=5 // pred_fallthru
        _
      %p921 = scmp.le.s32.totalorder 2, %s14
      // Predicated region
      $region45: #{feed_forward.1} parent=5 // pred_check
        %p922 = pneg %p921
      $region46: #{feed_forward.1} parent=5 // pred_check_branch
        %924 = sbr.rel (%p922) target = $region48
      $region47: #{feed_forward.1} parent=5 // pred_region
        %s925 = ssub.s32 %s14, 2
        // Predicated region
        $region49: #{feed_forward.1} parent=47 // pred_check
          %p926 = pneg %p153
        $region50: #{feed_forward.1} parent=47 // pred_check_branch
          %928 = sbr.rel (%p926) target = $region52
        $region51: #{feed_forward.1} parent=47 // pred_region
          %s929 = sand.u32 %s138, 1
          %s930 = scalar_lea.sflag [#allocation3], %s929
          %s931 = sand.u32 %s138, 1
          %s932 = smul.addr %s931, 8
          %s933 = scalar_lea.vmem [#allocation2], %s932
          %934 = dma.done %s930, 128
        $region52: #{feed_forward.1} parent=47 // pred_fallthru
          _
      $region48: #{feed_forward.1} parent=5 // pred_fallthru
        _
    $region6: #{feed_forward.1} parent=1 // loop_footer
      %s18 = sadd.s32 1, %s14
    $region7: #{feed_forward.1} parent=1 // loop_footer_branch
      %13 = sbr.rel target = $region3
    $region8: #{feed_forward.1} parent=1 // loop_exit
      _
    %935 = vsyncpa [#allocation3], 1
    %s936 = scalar_lea.sflag [#allocation3], 1
    %937 = vsyncpa %s936, 1

</llo_original>
